<compile_context>
chip_gen: v7x
topology: tpu7x:2x2x1
jax: 0.10.0
libtpu: 0.0.40
codegen_flags: <defaults>
</compile_context>

<pallas_src>
import jax
import jax.numpy as jnp
from jax.experimental import pallas as pl
from jax.experimental.pallas import tpu as pltpu

LANES = 128                       # lane width (last dim tiling)
BF16_SUBLANES = 16                # bf16 sublane tile is (16, 128)
VMEM_BUDGET = 24 * 1024 * 1024    # conservative working-set budget (< v7x 64 MiB)
MIN_GRID_STEPS = 4                # even, >= 2: both v7x TCs busy + DMA/compute overlap


def _round_up(x, m):
    return ((x + m - 1) // m) * m


def _cdiv(a, b):
    return -(-a // b)


# --------------------------------------------------------------------------
# Kernels
# --------------------------------------------------------------------------
def _linear_sigmoid_kernel(x_ref, w_ref, b_ref, o_ref):
    """o = sigmoid(x @ W + b) for one (TB, Fpad) batch tile; W fully resident."""
    # bf16 MXU inputs, f32 accumulation (native fast path on v5e/v6e/v7x).
    acc = jnp.dot(x_ref[...], w_ref[...], preferred_element_type=jnp.float32)
    o_ref[...] = jax.nn.sigmoid(acc + b_ref[...]).astype(o_ref.dtype)


def _linear_sigmoid_ksplit_kernel(x_ref, w_ref, b_ref, o_ref, acc_ref):
    """K-split variant: W streamed in (TK, Cpad) chunks, f32 accumulator scratch."""
    k = pl.program_id(1)

    @pl.when(k == 0)
    def _():
        acc_ref[...] = jnp.zeros_like(acc_ref)

    acc_ref[...] += jnp.dot(x_ref[...], w_ref[...],
                            preferred_element_type=jnp.float32)

    @pl.when(k == pl.num_programs(1) - 1)
    def _():
        o_ref[...] = jax.nn.sigmoid(acc_ref[...] + b_ref[...]).astype(o_ref.dtype)


# --------------------------------------------------------------------------
# Parameter preparation (done ONCE, hoisted out of the forward call path)
# --------------------------------------------------------------------------
def prepare_params(w, b, *, compute_dtype=jnp.bfloat16):
    """Pad (to lane-dense multiples of 128) and cast weights once.

    w: (F, C) float32, b: (C,) float32
    returns wp: (Fpad, Cpad) compute_dtype, bp: (1, Cpad) float32
    """
    F, C = w.shape
    Fpad = _round_up(F, LANES)
    Cpad = _round_up(C, LANES)
    wp = jnp.zeros((Fpad, Cpad), compute_dtype).at[:F, :C].set(
        w.astype(compute_dtype))
    bp = jnp.zeros((1, Cpad), jnp.float32).at[0, :C].set(b.astype(jnp.float32))
    return wp, bp


# --------------------------------------------------------------------------
# Forward pass
# --------------------------------------------------------------------------
def _choose_batch_tiles(B, per_row_bytes, resident_bytes):
    """Pick (TB, n_tiles) from the VMEM budget with >= MIN_GRID_STEPS even steps."""
    avail = VMEM_BUDGET - resident_bytes
    tb_cap = avail // per_row_bytes if avail > 0 else BF16_SUBLANES
    tb_cap = (tb_cap // BF16_SUBLANES) * BF16_SUBLANES
    tb_cap = max(BF16_SUBLANES, min(1024, tb_cap))
    n_tiles = max(MIN_GRID_STEPS, _cdiv(B, tb_cap))
    n_tiles = _round_up(n_tiles, 2)                      # even: shard across 2 TCs
    TB = _round_up(_cdiv(B, n_tiles), BF16_SUBLANES)     # adaptive -> small tail pad
    return TB, n_tiles


def classifier_forward(x, wp, bp, num_classes, *, out_dtype=jnp.float32):
    """sigmoid(x @ W + b) with pre-padded/cast weights from prepare_params.

    x:  (B, F) float32 (cast to wp.dtype inside the padding op)
    wp: (Fpad, Cpad) bf16, bp: (1, Cpad) float32
    returns (B, num_classes) out_dtype
    """
    B, F = x.shape
    Fpad, Cpad = wp.shape
    assert Fpad == _round_up(F, LANES), "wp was padded for a different in_features"
    C = num_classes
    in_bytes = jnp.dtype(wp.dtype).itemsize
    out_bytes = jnp.dtype(out_dtype).itemsize

    resident_w_bytes = Fpad * Cpad * in_bytes + Cpad * 4   # Buffered(1) W + b

    if resident_w_bytes <= 0.75 * VMEM_BUDGET:
        # ---------------- resident-weight path ----------------
        per_row = 2 * Fpad * in_bytes + 2 * Cpad * out_bytes   # dbl-buffered x + out
        TB, n_tiles = _choose_batch_tiles(B, per_row, resident_w_bytes)
        Bpad = TB * n_tiles

        # bf16 cast fused into the padding op (no per-tile cast in-kernel).
        xp = jnp.zeros((Bpad, Fpad), wp.dtype).at[:B, :F].set(x.astype(wp.dtype))

        footprint = resident_w_bytes + TB * per_row
        vmem_limit = int(max(footprint + (4 << 20), 16 << 20))

        out = pl.pallas_call(
            _linear_sigmoid_kernel,
            out_shape=jax.ShapeDtypeStruct((Bpad, Cpad), out_dtype),
            grid=(n_tiles,),
            in_specs=[
                pl.BlockSpec((TB, Fpad), lambda i: (i, 0)),               # x tiled
                pl.BlockSpec((Fpad, Cpad), lambda i: (0, 0),
                             pipeline_mode=pl.Buffered(1)),               # W resident
                pl.BlockSpec((1, Cpad), lambda i: (0, 0),
                             pipeline_mode=pl.Buffered(1)),               # b resident
            ],
            out_specs=pl.BlockSpec((TB, Cpad), lambda i: (i, 0)),
            compiler_params=pltpu.CompilerParams(
                dimension_semantics=("parallel",),
                vmem_limit_bytes=vmem_limit),
            cost_estimate=pl.CostEstimate(
                flops=2 * Bpad * Fpad * Cpad,
                transcendentals=Bpad * Cpad,
                bytes_accessed=(Bpad * Fpad * in_bytes + Fpad * Cpad * in_bytes
                                + Cpad * 4 + Bpad * Cpad * out_bytes)),
        )(xp, wp, bp)
    else:
        # ---------------- K-split path (W too large to hold resident) ----------------
        TK = 128
        for cand in (2048, 1024, 512, 256):
            if Fpad % cand == 0:
                TK = cand
                break
        resident_k = 2 * TK * Cpad * in_bytes + Cpad * 4        # dbl-buffered W chunk + b
        per_row = (2 * TK * in_bytes + 2 * Cpad * out_bytes     # x + out buffers
                   + Cpad * 4)                                  # f32 acc scratch
        TB, n_tiles = _choose_batch_tiles(B, per_row, resident_k)
        Bpad = TB * n_tiles

        xp = jnp.zeros((Bpad, Fpad), wp.dtype).at[:B, :F].set(x.astype(wp.dtype))

        footprint = resident_k + TB * per_row
        vmem_limit = int(max(footprint + (4 << 20), 16 << 20))

        out = pl.pallas_call(
            _linear_sigmoid_ksplit_kernel,
            out_shape=jax.ShapeDtypeStruct((Bpad, Cpad), out_dtype),
            grid=(n_tiles, Fpad // TK),
            in_specs=[
                pl.BlockSpec((TB, TK), lambda i, k: (i, k)),              # x tiled in B,K
                pl.BlockSpec((TK, Cpad), lambda i, k: (k, 0)),            # W streamed in K
                pl.BlockSpec((1, Cpad), lambda i, k: (0, 0),
                             pipeline_mode=pl.Buffered(1)),               # b resident
            ],
            out_specs=pl.BlockSpec((TB, Cpad), lambda i, k: (i, 0)),
            scratch_shapes=[pltpu.VMEM((TB, Cpad), jnp.float32)],
            compiler_params=pltpu.CompilerParams(
                dimension_semantics=("parallel", "arbitrary"),
                vmem_limit_bytes=vmem_limit),
            cost_estimate=pl.CostEstimate(
                flops=2 * Bpad * Fpad * Cpad,
                transcendentals=Bpad * Cpad,
                bytes_accessed=(Bpad * Fpad * in_bytes + Fpad * Cpad * in_bytes
                                + Cpad * 4 + Bpad * Cpad * out_bytes)),
        )(xp, wp, bp)

    # Padded columns hold sigmoid(0)=0.5 and padded rows sigmoid(b); slice off.
    return out[:B, :C]


def reference_forward(x, w, b):
    return jax.nn.sigmoid(x @ w + b[None, :])


if __name__ == "__main__":
    # Small deterministic shapes: batch=8, features=32, classes=10.
    B, F, C = 8, 32, 10
    key = jax.random.PRNGKey(0)
    kx, kw, kb = jax.random.split(key, 3)

    x = jax.random.normal(kx, (B, F), dtype=jnp.float32)
    # nn.Linear-like uniform(-1/sqrt(F), 1/sqrt(F)) init.
    bound = 1.0 / jnp.sqrt(jnp.float32(F))
    w = jax.random.uniform(kw, (F, C), minval=-bound, maxval=bound,
                           dtype=jnp.float32)
    b = jax.random.uniform(kb, (C,), minval=-bound, maxval=bound,
                           dtype=jnp.float32)

    # Weight padding/cast done once, outside the per-call path.
    wp, bp = prepare_params(w, b)

    fwd = jax.jit(classifier_forward, static_argnames=("num_classes", "out_dtype"))
    out = fwd(x, wp, bp, num_classes=C)
    out = jax.block_until_ready(out)

    ref = reference_forward(x, w, b)
    assert out.shape == (B, C)
    # bf16 MXU inputs (f32 accumulate) vs f32 reference -> bf16-rounding tolerance.
    assert jnp.allclose(out, ref, atol=1e-2, rtol=1e-2), "mismatch vs reference"

    print("KERNEL_OK")
</pallas_src>

<mosaic_0001>
module attributes {stable_mosaic.version = 11 : i64} {
  func.func @_linear_sigmoid_kernel(%arg0: i32, %arg1: memref<16x128xbf16, #tpu.memory_space<vmem>>, %arg2: memref<128x128xbf16, #tpu.memory_space<vmem>>, %arg3: memref<1x128xf32, #tpu.memory_space<vmem>>, %arg4: memref<16x128xf32, #tpu.memory_space<vmem>>) attributes {dimension_semantics = [#tpu.dimension_semantics<parallel>], iteration_bounds = array<i64: 4>, scalar_prefetch = 0 : i64, scratch_operands = 0 : i64, tpu.core_type = #tpu.core_type<tc>, window_params = [{transform_indices = @transform_0, window_bounds = array<i64: 16, 128>}, {pipeline_mode = #tpu.pipeline_mode<synchronous>, transform_indices = @transform_1, window_bounds = array<i64: 128, 128>}, {pipeline_mode = #tpu.pipeline_mode<synchronous>, transform_indices = @transform_2, window_bounds = array<i64: 1, 128>}, {transform_indices = @transform_3, window_bounds = array<i64: 16, 128>}]} {
    %c0 = arith.constant 0 : index
    %c0_0 = arith.constant 0 : index
    %0 = vector.load %arg1[%c0, %c0_0] : memref<16x128xbf16, #tpu.memory_space<vmem>>, vector<16x128xbf16>
    %c0_1 = arith.constant 0 : index
    %c0_2 = arith.constant 0 : index
    %1 = vector.load %arg2[%c0_1, %c0_2] : memref<128x128xbf16, #tpu.memory_space<vmem>>, vector<128x128xbf16>
    %cst = arith.constant dense<0.000000e+00> : vector<16x128xf32>
    %2 = tpu.matmul %0, %1, %cst {dimension_numbers = #tpu.dot_dimension_numbers<[1], [0], [0], [1], [0, 0, 1, 1], [], []>} : vector<16x128xbf16>, vector<128x128xbf16>, vector<16x128xf32> -> vector<16x128xf32>
    %c0_3 = arith.constant 0 : index
    %c0_4 = arith.constant 0 : index
    %3 = vector.load %arg3[%c0_3, %c0_4] : memref<1x128xf32, #tpu.memory_space<vmem>>, vector<1x128xf32>
    %4 = vector.broadcast %3 : vector<1x128xf32> to vector<16x128xf32>
    %5 = arith.addf %2, %4 : vector<16x128xf32>
    %6 = arith.negf %5 : vector<16x128xf32>
    %7 = math.exp %6 : vector<16x128xf32>
    %cst_5 = arith.constant 1.000000e+00 : f32
    %8 = vector.broadcast %cst_5 : f32 to vector<16x128xf32>
    %9 = arith.addf %8, %7 : vector<16x128xf32>
    %10 = arith.divf %8, %9 : vector<16x128xf32>
    %c0_6 = arith.constant 0 : index
    %c0_7 = arith.constant 0 : index
    %11 = vector.load %arg4[%c0_6, %c0_7] : memref<16x128xf32, #tpu.memory_space<vmem>>, vector<16x128xf32>
    tpu.vector_store %arg4[%c0_6, %c0_7], %10 {strides = array<i32>} : memref<16x128xf32, #tpu.memory_space<vmem>>, vector<16x128xf32>,
    return
  }
  func.func @transform_0(%arg0: i32) -> (i32, i32) {
    %c0_i32 = arith.constant 0 : i32
    %c0_i32_0 = arith.constant 0 : i32
    return %arg0, %c0_i32 : i32, i32
  }
  func.func @transform_1(%arg0: i32) -> (i32, i32) {
    %c0_i32 = arith.constant 0 : i32
    %c0_i32_0 = arith.constant 0 : i32
    %c0_i32_1 = arith.constant 0 : i32
    return %c0_i32, %c0_i32_0 : i32, i32
  }
  func.func @transform_2(%arg0: i32) -> (i32, i32) {
    %c0_i32 = arith.constant 0 : i32
    %c0_i32_0 = arith.constant 0 : i32
    %c0_i32_1 = arith.constant 0 : i32
    return %c0_i32, %c0_i32_0 : i32, i32
  }
  func.func @transform_3(%arg0: i32) -> (i32, i32) {
    %c0_i32 = arith.constant 0 : i32
    %c0_i32_0 = arith.constant 0 : i32
    return %arg0, %c0_i32 : i32, i32
  }
}

</mosaic_0001>

<llo_original>
// kernel: classifier_forward.1
$region0: #{classifier_forward.1}
  #allocation0 [shape = 'u32[]', space=smem, size = 0x4, offset = 0x4, fixed_abs, tag = 'smem constant byte address 0x4 - core index']
  #allocation1 [shape = 'u32[144,128]{1,0:T(1,128)}', space=vmem, size = 0x12000, scoped, tag = 'internal scratch']
  %s0 = inlined_call_operand.vmem [shape: bf16[64,128], index: 0, kind: input, shape index: {}]
  %s1 = inlined_call_operand.hbm [shape: bf16[128,128], index: 1, kind: input, shape index: {}]
  %s2 = inlined_call_operand.vmem [shape: f32[1,128], index: 2, kind: input, shape index: {}]
  %s3 = inlined_call_operand.vmem [shape: f32[64,128], index: 3, kind: output, shape index: {}]
  %s4 = sld [smem:[#allocation0]]
  $region49: #{classifier_forward.1} parent=0
    _
  %s6 = ssub.s32 1, %s4
  %s7 = scalar_select 0, %s6, %s4
  $region1: #{classifier_forward.1} parent=0
    #allocation2 [shape = 'u8[32768]{0}', space=vmem, size = 0x8000, scoped, tag = 'input window, operand 1, single buffered']
    #allocation3 [shape = 's32[2]{0}', space=sflag, size = 0x8, scoped, tag = 'scoped memory for classifier_forward.1']
    %8 = vsyncpa [#allocation3], 0
    loop: start=0, step=1, limit=6
    $region2: #{classifier_forward.1} parent=1 // loop_pre_header
      _
    $region3: #{classifier_forward.1} parent=1 // loop_header
      %s10 = sphi 0, %s14
      %p11 = scmp.ge.s32.totalorder %s10, 6
      %s20 = sphi 0, %s22
      %s23 = sphi 0, %s20
      %s24 = sphi 0, %s23
      %s40 = sphi 0, %s24
      %s44 = sphi 0, %s44
      %s46 = sphi 0, %s44
      %s47 = sphi 0, %s46
      %s61 = sphi 0, %s47
      %s65 = sphi 0, %s65
      %s67 = sphi 0, %s65
      %s68 = sphi 0, %s67
      %s82 = sphi 0, %s68
      %s88 = sphi 0, %s90
      %s91 = sphi 0, %s88
      %s92 = sphi 0, %s91
      %s108 = sphi 0, %s92
    $region4: #{classifier_forward.1} parent=1 // loop_header_branch
      %13 = sbr.rel (%p11) target = $region8
    $region5: #{classifier_forward.1} parent=1 // loop_body
      %s15 = ssub.s32 %s10, 1
      %s16 = ssub.s32 %s10, 2
      %s17 = sadd.s32 %s10, 1
      %s18 = ssub.s32 %s10, %s17
      %p19 = scmp.eq.s32.totalorder %s18, 0
      %s21 = sadd.s32 %s20, 1
      %s22 = scalar_select %p19, %s20, %s21
      %p25 = pneg %p19
      %p26 = scmp.eq.s32.totalorder %s10, 3
      %p27 = por %p25, %p26
      %p28 = scmp.ne.s32.totalorder %s20, %s23
      %p29 = scmp.eq.s32.totalorder %s10, 0
      %p30 = por %p28, %p29
      %p31 = scmp.ne.s32.totalorder %s20, %s23
      %p32 = scmp.eq.s32.totalorder %s15, 3
      %p33 = por %p31, %p32
      %p34 = scmp.ne.s32.totalorder %s23, %s24
      %p35 = scmp.eq.s32.totalorder %s15, 0
      %p36 = por %p34, %p35
      %p37 = scmp.ne.s32.totalorder %s23, %s24
      %p38 = scmp.eq.s32.totalorder %s16, 3
      %p39 = por %p37, %p38
      %p41 = scmp.ne.s32.totalorder %s24, %s40
      %p42 = scmp.eq.s32.totalorder %s16, 0
      %p43 = por %p41, %p42
      %s45 = sadd.s32 %s44, 1
      %p48 = scmp.eq.s32.totalorder %s10, 3
      %p49 = scmp.ne.s32.totalorder %s44, %s46
      %p50 = scmp.eq.s32.totalorder %s10, 0
      %p51 = por %p49, %p50
      %p52 = scmp.ne.s32.totalorder %s44, %s46
      %p53 = scmp.eq.s32.totalorder %s15, 3
      %p54 = por %p52, %p53
      %p55 = scmp.ne.s32.totalorder %s46, %s47
      %p56 = scmp.eq.s32.totalorder %s15, 0
      %p57 = por %p55, %p56
      %p58 = scmp.ne.s32.totalorder %s46, %s47
      %p59 = scmp.eq.s32.totalorder %s16, 3
      %p60 = por %p58, %p59
      %p62 = scmp.ne.s32.totalorder %s47, %s61
      %p63 = scmp.eq.s32.totalorder %s16, 0
      %p64 = por %p62, %p63
      %s66 = sadd.s32 %s65, 1
      %p69 = scmp.eq.s32.totalorder %s10, 3
      %p70 = scmp.ne.s32.totalorder %s65, %s67
      %p71 = scmp.eq.s32.totalorder %s10, 0
      %p72 = por %p70, %p71
      %p73 = scmp.ne.s32.totalorder %s65, %s67
      %p74 = scmp.eq.s32.totalorder %s15, 3
      %p75 = por %p73, %p74
      %p76 = scmp.ne.s32.totalorder %s67, %s68
      %p77 = scmp.eq.s32.totalorder %s15, 0
      %p78 = por %p76, %p77
      %p79 = scmp.ne.s32.totalorder %s67, %s68
      %p80 = scmp.eq.s32.totalorder %s16, 3
      %p81 = por %p79, %p80
      %p83 = scmp.ne.s32.totalorder %s68, %s82
      %p84 = scmp.eq.s32.totalorder %s16, 0
      %p85 = por %p83, %p84
      %s86 = ssub.s32 %s10, %s17
      %p87 = scmp.eq.s32.totalorder %s86, 0
      %s89 = sadd.s32 %s88, 1
      %s90 = scalar_select %p87, %s88, %s89
      %p93 = pneg %p87
      %p94 = scmp.eq.s32.totalorder %s10, 3
      %p95 = por %p93, %p94
      %p96 = scmp.ne.s32.totalorder %s88, %s91
      %p97 = scmp.eq.s32.totalorder %s10, 0
      %p98 = por %p96, %p97
      %p99 = scmp.ne.s32.totalorder %s88, %s91
      %p100 = scmp.eq.s32.totalorder %s15, 3
      %p101 = por %p99, %p100
      %p102 = scmp.ne.s32.totalorder %s91, %s92
      %p103 = scmp.eq.s32.totalorder %s15, 0
      %p104 = por %p102, %p103
      %p105 = scmp.ne.s32.totalorder %s91, %s92
      %p106 = scmp.eq.s32.totalorder %s16, 3
      %p107 = por %p105, %p106
      %p109 = scmp.ne.s32.totalorder %s92, %s108
      %p110 = scmp.eq.s32.totalorder %s16, 0
      %p111 = por %p109, %p110
      %p112 = scmp.le.s32.totalorder 1, %s10
      %p113 = scmp.lt.s32.totalorder %s10, 5
      %p114 = pnand %p112, %p113
      %p115 = pneg %p114
      // Predicated region
      $region9: #{classifier_forward.1} parent=5 // pred_check
        _
      $region10: #{classifier_forward.1} parent=5 // pred_check_branch
        %117 = sbr.rel (%p114) target = $region12
      $region11: #{classifier_forward.1} parent=5 // pred_region
        %s118 = ssub.s32 %s10, 1
        // Predicated region
        $region13: #{classifier_forward.1} parent=11 // pred_check
          %p119 = pneg %p57
        $region14: #{classifier_forward.1} parent=11 // pred_check_branch
          %121 = sbr.rel (%p119) target = $region16
        $region15: #{classifier_forward.1} parent=11 // pred_region
          %s123 = ssub.s32 1024, 1024
          %124 = vsyncadd [#allocation3], %s123
          %s125 = sshll.u32 [#allocation2], 4
          %s126 = int_to_ptr.vmem [resolvable:$true] %s125
          %131 = dma.hbm_to_vmem [thread:$0]  %s1, 1024, %s126, [#allocation3], 64, 64, 4
        $region16: #{classifier_forward.1} parent=11 // pred_fallthru
          _
        // Predicated region
        $region17: #{classifier_forward.1} parent=11 // pred_check
          %p132 = pneg %p78
        $region18: #{classifier_forward.1} parent=11 // pred_check_branch
          %134 = sbr.rel (%p132) target = $region20
        $region19: #{classifier_forward.1} parent=11 // pred_region
          _
        $region20: #{classifier_forward.1} parent=11 // pred_fallthru
          _
      $region12: #{classifier_forward.1} parent=5 // pred_fallthru
        _
      %p135 = scmp.lt.s32.totalorder %s10, 4
      // Predicated region
      $region21: #{classifier_forward.1} parent=5 // pred_check
        %p136 = pneg %p135
      $region22: #{classifier_forward.1} parent=5 // pred_check_branch
        %138 = sbr.rel (%p136) target = $region24
      $region23: #{classifier_forward.1} parent=5 // pred_region
        // Predicated region
        $region25: #{classifier_forward.1} parent=23 // pred_check
          %p139 = pneg %p30
        $region26: #{classifier_forward.1} parent=23 // pred_check_branch
          %141 = sbr.rel (%p139) target = $region28
        $region27: #{classifier_forward.1} parent=23 // pred_region
          %s142 = smul.u32 2, %s10
          %p143 = scmp.lt.s32.totalorder %s142, 7
          %s144 = scalar_select %p143, %s142, 7
          %s145 = smul.addr %s144, 4
          %s146 = scalar_lea.vmem %s0, %s145
          %s147 = smul.u32 2, %s10
        $region28: #{classifier_forward.1} parent=23 // pred_fallthru
          _
      $region24: #{classifier_forward.1} parent=5 // pred_fallthru
        _
      %p148 = scmp.le.s32.totalorder 1, %s10
      %p149 = scmp.lt.s32.totalorder %s10, 5
      %p150 = pnand %p148, %p149
      %p151 = pneg %p150
      // Predicated region
      $region29: #{classifier_forward.1} parent=5 // pred_check
        _
      $region30: #{classifier_forward.1} parent=5 // pred_check_branch
        %153 = sbr.rel (%p150) target = $region32
      $region31: #{classifier_forward.1} parent=5 // pred_region
        %s154 = ssub.s32 %s10, 1
        // Predicated region
        $region33: #{classifier_forward.1} parent=31 // pred_check
          %p155 = pneg %p57
        $region34: #{classifier_forward.1} parent=31 // pred_check_branch
          %157 = sbr.rel (%p155) target = $region36
        $region35: #{classifier_forward.1} parent=31 // pred_region
          %158 = dma.done [#allocation3], 1024
        $region36: #{classifier_forward.1} parent=31 // pred_fallthru
          _
        %s159 = smul.u32 2, %s15
        %p160 = scmp.lt.s32.totalorder %s159, 7
        %s161 = scalar_select %p160, %s159, 7
        %s162 = smul.addr %s161, 4
        %s163 = scalar_lea.vmem %s0, %s162
        %p164 = pneg %p36
        %p165 = pneg %p33
        %p166 = pneg %p57
        %p167 = pneg %p54
        %p168 = pneg %p78
        %p169 = pneg %p75
        %p170 = pneg %p104
        %p171 = pneg %p101
        %s172 = smul.u32 2, %s15
        %p173 = scmp.lt.s32.totalorder %s172, 7
        %s174 = scalar_select %p173, %s172, 7
        %s175 = smul.addr %s174, 8
        %s176 = scalar_lea.vmem %s3, %s175
        %s177 = smul.u32 2, %s15
        %p178 = scmp.lt.s32.totalorder %s177, 7
        %s179 = scalar_select %p178, %s177, 7
        %s180 = smul.addr %s179, 4
        %s181 = scalar_lea.vmem %s0, %s180
        %s182 = smul.u32 2, %s15
        %s183 = smul.u32 2, %s15
        %p184 = scmp.lt.s32.totalorder %s183, 7
        %s185 = scalar_select %p184, %s183, 7
        %s186 = smul.addr %s185, 8
        %s187 = scalar_lea.vmem %s3, %s186
        %s188 = smul.u32 2, %s15
        %v190 = vld [vmem:[%s181] sm:$0xf]
        %v191 = vld [vmem:[%s181 + $0x4] sm:$0xf]
        %v192 = vld [vmem:[#allocation2] sm:$0xf]
        %v193 = vld [vmem:[#allocation2 + $0x4] sm:$0xf]
        %v194 = vld [vmem:[#allocation2 + $0x8] sm:$0xf]
        %v195 = vld [vmem:[#allocation2 + $0xc] sm:$0xf]
        %v196 = vld [vmem:[#allocation2 + $0x10] sm:$0xf]
        %v197 = vld [vmem:[#allocation2 + $0x14] sm:$0xf]
        %v198 = vld [vmem:[#allocation2 + $0x18] sm:$0xf]
        %v199 = vld [vmem:[#allocation2 + $0x1c] sm:$0xf]
        %v200 = vld [vmem:[#allocation2 + $0x20] sm:$0xf]
        %v201 = vld [vmem:[#allocation2 + $0x24] sm:$0xf]
        %v202 = vld [vmem:[#allocation2 + $0x28] sm:$0xf]
        %v203 = vld [vmem:[#allocation2 + $0x2c] sm:$0xf]
        %v204 = vld [vmem:[#allocation2 + $0x30] sm:$0xf]
        %v205 = vld [vmem:[#allocation2 + $0x34] sm:$0xf]
        %v206 = vld [vmem:[#allocation2 + $0x38] sm:$0xf]
        %v207 = vld [vmem:[#allocation2 + $0x3c] sm:$0xf]
        %v208 = vld [vmem:[%s2] sm:$0x1]
        %v210 = vlaneseq
        %v211 = vshrl.u32 %v210, 7
        %v212 = vsub.s32 0, %v211
        %v213 = vrot.slane %v208, %v212
        %v217 = vunpack.c.l.b16 %v190
        %v218 = vunpack.c.l.b16 %v191
        %v219 = vpack.c.b16 %v218, %v217
        %v237 = vunpack.c.l.b16 %v192
        %v238 = vunpack.c.l.b16 %v193
        %v239 = vunpack.c.l.b16 %v194
        %v240 = vunpack.c.l.b16 %v195
        %v241 = vunpack.c.l.b16 %v196
        %v242 = vunpack.c.l.b16 %v197
        %v243 = vunpack.c.l.b16 %v198
        %v244 = vunpack.c.l.b16 %v199
        %v245 = vunpack.c.l.b16 %v200
        %v246 = vunpack.c.l.b16 %v201
        %v247 = vunpack.c.l.b16 %v202
        %v248 = vunpack.c.l.b16 %v203
        %v249 = vunpack.c.l.b16 %v204
        %v250 = vunpack.c.l.b16 %v205
        %v251 = vunpack.c.l.b16 %v206
        %v252 = vunpack.c.l.b16 %v207
        %v253 = vpack.c.b16 %v238, %v237
        %v254 = vpack.c.b16 %v240, %v239
        %v255 = vpack.c.b16 %v242, %v241
        %v256 = vpack.c.b16 %v244, %v243
        %v257 = vpack.c.b16 %v246, %v245
        %v258 = vpack.c.b16 %v248, %v247
        %v259 = vpack.c.b16 %v250, %v249
        %v260 = vpack.c.b16 %v252, %v251
        %269 = vmatprep.subr.bf16.mxu0 0
        %270 = vmatpush1.bf16.msra.mxu0 %v253
        %271 = vmatprep.subr.bf16.mxu0 0
        %272 = vmatpush1.bf16.msra.mxu0 %v254
        %273 = vmatprep.subr.bf16.mxu0 0
        %274 = vmatpush1.bf16.msra.mxu0 %v255
        %275 = vmatprep.subr.bf16.mxu0 0
        %276 = vmatpush1.bf16.msra.mxu0 %v256
        %277 = vmatprep.subr.bf16.mxu0 0
        %278 = vmatpush1.bf16.msra.mxu0 %v257
        %279 = vmatprep.subr.bf16.mxu0 0
        %280 = vmatpush1.bf16.msra.mxu0 %v258
        %281 = vmatprep.subr.bf16.mxu0 0
        %282 = vmatpush1.bf16.msra.mxu0 %v259
        %283 = vmatprep.subr.bf16.mxu0 0
        %284 = vmatpush1.bf16.msra.mxu0 %v260
        %285 = vmatprep.subr.bf16.mxu0 0
        %286 = vmatpush1.bf16.msra.mxu0 0
        %287 = vmatprep.subr.bf16.mxu0 0
        %288 = vmatpush1.bf16.msra.mxu0 0
        %289 = vmatprep.subr.bf16.mxu0 0
        %290 = vmatpush1.bf16.msra.mxu0 0
        %291 = vmatprep.subr.bf16.mxu0 0
        %292 = vmatpush1.bf16.msra.mxu0 0
        %293 = vmatprep.subr.bf16.mxu0 0
        %294 = vmatpush1.bf16.msra.mxu0 0
        %295 = vmatprep.subr.bf16.mxu0 0
        %296 = vmatpush1.bf16.msra.mxu0 0
        %297 = vmatprep.subr.bf16.mxu0 0
        %298 = vmatpush1.bf16.msra.mxu0 0
        %299 = vmatprep.subr.bf16.mxu0 0
        %300 = vmatpush1.bf16.msra.mxu0 0
        %301 = vmatprep.mubr.bf16.mxu0 0
        %302 = vmatmul.mubr.bf16.gmra.mrb[0].mxu0 %v219
        %v303 = vpop.f32.mrb[0].mxu0
        %v304 = vadd.f32 %v213, %v303
        %v305 = vpop.f32.mrb[0].mxu0
        %v306 = vpop.f32.mrb[0].mxu0
        %v307 = vadd.f32 %v213, %v306
        %v308 = vpop.f32.mrb[0].mxu0
        %309 = vdwg.mxu0
        %v310 = vxor.u32 %v304, 2147483648
        %v311 = vxor.u32 %v307, 2147483648
        %v312 = vmul.f32 %v310, 1.442695
        %v313 = vpow.pop %v312
        %v314 = vmul.f32 %v311, 1.442695
        %v315 = vpow.pop %v314
        %v316 = vadd.f32 %v313, 1.0
        %v317 = vadd.f32 %v315, 1.0
        %v318 = vrcp.pop %v316
        %v319 = vmul.f32 1.0, %v318
        %v320 = vrcp.pop %v317
        %v321 = vmul.f32 1.0, %v320
        %322 = vst [vmem:[%s187] sm:$0xff] %v319
        %323 = vst [vmem:[%s187 + $0x8] sm:$0xff] %v321
        %s324 = smul.u32 2, %s15
        %p325 = scmp.lt.s32.totalorder %s324, 7
        %s326 = scalar_select %p325, %s324, 7
        %s327 = smul.addr %s326, 8
        %s328 = scalar_lea.vmem %s3, %s327
        // Predicated region
        $region37: #{classifier_forward.1} parent=31 // pred_check
          %p329 = pneg %p101
        $region38: #{classifier_forward.1} parent=31 // pred_check_branch
          %331 = sbr.rel (%p329) target = $region40
        $region39: #{classifier_forward.1} parent=31 // pred_region
          %s332 = smul.u32 2, %s15
        $region40: #{classifier_forward.1} parent=31 // pred_fallthru
          _
      $region32: #{classifier_forward.1} parent=5 // pred_fallthru
        _
      %p333 = scmp.le.s32.totalorder 2, %s10
      // Predicated region
      $region41: #{classifier_forward.1} parent=5 // pred_check
        %p334 = pneg %p333
      $region42: #{classifier_forward.1} parent=5 // pred_check_branch
        %336 = sbr.rel (%p334) target = $region44
      $region43: #{classifier_forward.1} parent=5 // pred_region
        %s337 = ssub.s32 %s10, 2
        // Predicated region
        $region45: #{classifier_forward.1} parent=43 // pred_check
          %p338 = pneg %p107
        $region46: #{classifier_forward.1} parent=43 // pred_check_branch
          %340 = sbr.rel (%p338) target = $region48
        $region47: #{classifier_forward.1} parent=43 // pred_region
          %s341 = smul.u32 2, %s16
          %p342 = scmp.lt.s32.totalorder %s341, 7
          %s343 = scalar_select %p342, %s341, 7
          %s344 = smul.addr %s343, 8
          %s345 = scalar_lea.vmem %s3, %s344
        $region48: #{classifier_forward.1} parent=43 // pred_fallthru
          _
      $region44: #{classifier_forward.1} parent=5 // pred_fallthru
        _
    $region6: #{classifier_forward.1} parent=1 // loop_footer
      %s14 = sadd.s32 1, %s10
    $region7: #{classifier_forward.1} parent=1 // loop_footer_branch
      %9 = sbr.rel target = $region3
    $region8: #{classifier_forward.1} parent=1 // loop_exit
      _
    %346 = vsyncpa [#allocation3], 1
    %s347 = scalar_lea.sflag [#allocation3], 1
    %348 = vsyncpa %s347, 1

</llo_original>
